<compile_context>
chip_gen: v7x
topology: tpu7x:2x2x1
jax: 0.10.0
libtpu: 0.0.40
codegen_flags: <defaults>
</compile_context>

<pallas_src>
import jax
import jax.numpy as jnp
from jax import lax
from jax.experimental import pallas as pl
from jax.experimental.pallas import tpu as pltpu

MARGIN = 1.2


def _res50_loss_kernel(feat_ref, logit_ref, lbl_col_ref, lbl_row_ref,   # inputs
                       out_ref,                                          # output
                       m_ref, l_ref, picked_ref):                        # scratch
    """Grid axis 0 streams class tiles of the logits (online logsumexp).

    feat_ref    : (B, D)  native dtype -- outputs[0] features, resident across grid
    logit_ref   : (B, TC) native dtype -- outputs[1] class tile for this grid step
    lbl_col_ref : (B, 1)  int32        -- labels, column layout (resident)
    lbl_row_ref : (1, B)  int32        -- labels, row / lane-major layout (resident)
    out_ref     : (1,)    f32, SMEM    -- scalar total loss
    m/l/picked  : (B, 1)  f32, VMEM    -- running max / running sum-exp / picked logit
    """
    c = pl.program_id(0)
    nc = pl.num_programs(0)

    @pl.when(c == 0)
    def _init():
        m_ref[...] = jnp.full(m_ref.shape, -jnp.inf, dtype=jnp.float32)
        l_ref[...] = jnp.zeros(l_ref.shape, dtype=jnp.float32)
        picked_ref[...] = jnp.zeros(picked_ref.shape, dtype=jnp.float32)

    # -------------- Cross entropy: online logsumexp over class tiles --------------
    B, TC = logit_ref.shape
    logits = logit_ref[...].astype(jnp.float32)          # f32 VPU/EUP math (v5e-safe)
    labels_col = lbl_col_ref[...]                        # (B, 1) int32

    m_blk = jnp.max(logits, axis=-1, keepdims=True)      # (B, 1)
    m_new = jnp.maximum(m_ref[...], m_blk)
    alpha = jnp.exp(m_ref[...] - m_new)                  # == 0 on the first tile (m == -inf)
    l_ref[...] = alpha * l_ref[...] + jnp.sum(jnp.exp(logits - m_new), axis=-1, keepdims=True)
    m_ref[...] = m_new

    cls_iota = lax.broadcasted_iota(jnp.int32, (B, TC), 1) + c * TC
    onehot = (cls_iota == labels_col).astype(jnp.float32)
    picked_ref[...] += jnp.sum(logits * onehot, axis=-1, keepdims=True)

    @pl.when(c == nc - 1)
    def _finalize():
        ce = jnp.mean(m_ref[...] + jnp.log(l_ref[...]) - picked_ref[...])

        # ---------------- Batch-hard triplet loss (margin = 1.2) ----------------
        feats_bf = feat_ref[...].astype(jnp.bfloat16)    # bf16 MXU operands
        feats_f32 = feat_ref[...].astype(jnp.float32)    # f32 VPU math

        # gram = F @ F^T via dot_general contracting D on both operands
        # (no transposed copy, feeds the MXU directly), f32 accumulation.
        gram = lax.dot_general(
            feats_bf, feats_bf,
            dimension_numbers=(((1,), (1,)), ((), ())),
            preferred_element_type=jnp.float32)                              # (B, B)

        f2 = feats_f32 * feats_f32
        sq_col = jnp.sum(f2, axis=-1, keepdims=True)                         # (B, 1)
        # (1, B) row of squared norms via a tiny MXU matmul with a ones row:
        # keeps the norms lane-major without a sublane<->lane XLU transpose.
        ones_row = jnp.ones((1, f2.shape[1]), dtype=jnp.float32)
        sq_row = lax.dot_general(
            ones_row, f2,
            dimension_numbers=(((1,), (1,)), ((), ())),
            preferred_element_type=jnp.float32)                              # (1, B)

        # euclidean_dist: sqrt(clamp(||xi||^2 + ||xj||^2 - 2 xi.xj, min=1e-12))
        dist = jnp.sqrt(jnp.maximum(sq_col + sq_row - 2.0 * gram, 1e-12))    # (B, B)

        is_pos = labels_col == lbl_row_ref[...]                              # (B, B) bool
        # hardest positive: max over same-label pairs (diagonal included, as in torch
        # hard_example_mining); distances are >= 0 so masking with 0 is safe.
        dist_ap = jnp.max(jnp.where(is_pos, dist, 0.0), axis=-1, keepdims=True)      # (B, 1)
        # hardest negative: min over different-label pairs; anchors with no in-batch
        # negative get dist_an = +inf and contribute 0 to the loss.
        dist_an = jnp.min(jnp.where(is_pos, jnp.inf, dist), axis=-1, keepdims=True)  # (B, 1)

        # MarginRankingLoss(dist_an, dist_ap, y=1) = mean(relu(margin + dist_ap - dist_an))
        triplet = jnp.mean(jnp.maximum(MARGIN + dist_ap - dist_an, 0.0))

        out_ref[0] = triplet + 2.0 * ce
    # TODO(synk): logger.info side-effect from the PyTorch module has no kernel equivalent.


def _pick_class_tile(C, max_tile=2048):
    """Largest tile <= max_tile that is a multiple of 128 and divides C; else C."""
    if C % 128 == 0:
        t = (min(max_tile, C) // 128) * 128
        while t >= 128:
            if C % t == 0:
                return t
            t -= 128
    return C


def res50_loss(feats, logits, labels, *, class_tile=None):
    """feats = outputs[0] (B, D), logits = outputs[1] (B, C), labels (B,) int."""
    B, D = feats.shape
    B2, C = logits.shape
    assert B == B2
    labels_col = labels.reshape(B, 1).astype(jnp.int32)
    labels_row = labels.reshape(1, B).astype(jnp.int32)

    tc = class_tile if class_tile is not None else _pick_class_tile(C)
    assert C % tc == 0
    nc = C // tc

    bytes_f = feats.dtype.itemsize
    bytes_l = logits.dtype.itemsize

    # Scoped VMEM limit with headroom: resident feats/labels, double-buffered logits
    # tile, (B,B) f32 distance temporaries and (B,TC) f32 CE temporaries.
    vmem_bytes = (B * D * bytes_f
                  + 2 * B * tc * bytes_l
                  + 4 * B * 4
                  + 8 * B * B * 4
                  + 5 * B * tc * 4
                  + 4 * B * 4
                  + (2 << 20))
    vmem_bytes = int(min(max(vmem_bytes, 32 * 1024 * 1024), 64 * 1024 * 1024))

    cost = pl.CostEstimate(
        flops=2 * B * B * D + 12 * B * B + 8 * B * C,
        transcendentals=B * C + B * B + 2 * B,          # exp per logit, sqrt per pair, log
        bytes_accessed=B * D * bytes_f + B * C * bytes_l + 2 * B * 4 + 4,
    )

    out = pl.pallas_call(
        _res50_loss_kernel,
        out_shape=jax.ShapeDtypeStruct((1,), jnp.float32),
        grid_spec=pltpu.PrefetchScalarGridSpec(
            num_scalar_prefetch=0,
            grid=(nc,),
            in_specs=[
                pl.BlockSpec((B, D), lambda c: (0, 0)),    # feats: resident
                pl.BlockSpec((B, tc), lambda c: (0, c)),   # logits: streamed class tiles
                pl.BlockSpec((B, 1), lambda c: (0, 0)),    # labels, column layout
                pl.BlockSpec((1, B), lambda c: (0, 0)),    # labels, lane-major row layout
            ],
            out_specs=pl.BlockSpec(memory_space=pltpu.MemorySpace.SMEM),
            scratch_shapes=[
                pltpu.VMEM((B, 1), jnp.float32),   # running max
                pltpu.VMEM((B, 1), jnp.float32),   # running sum of exp
                pltpu.VMEM((B, 1), jnp.float32),   # picked (true-class) logit
            ],
        ),
        compiler_params=pltpu.CompilerParams(
            dimension_semantics=("arbitrary",),
            vmem_limit_bytes=vmem_bytes,
        ),
        cost_estimate=cost,
    )(feats, logits, labels_col, labels_row)
    return out[0]


def _reference(feats, logits, labels):
    """Pure-JAX reference for correctness checking."""
    feats = feats.astype(jnp.float32)
    logits = logits.astype(jnp.float32)
    sq = jnp.sum(feats * feats, axis=-1, keepdims=True)
    dist = jnp.sqrt(jnp.maximum(sq + sq.T - 2.0 * feats @ feats.T, 1e-12))
    is_pos = labels[:, None] == labels[None, :]
    dist_ap = jnp.max(jnp.where(is_pos, dist, 0.0), axis=-1)
    dist_an = jnp.min(jnp.where(is_pos, jnp.inf, dist), axis=-1)
    triplet = jnp.mean(jnp.maximum(MARGIN + dist_ap - dist_an, 0.0))
    logp = jax.nn.log_softmax(logits, axis=-1)
    ce = -jnp.mean(jnp.take_along_axis(logp, labels[:, None], axis=-1))
    return triplet + 2.0 * ce


if __name__ == "__main__":
    key = jax.random.PRNGKey(0)
    k_feat, k_logit, k_label = jax.random.split(key, 3)

    B, D, C = 8, 32, 16  # batch, feature dim, num classes
    # Native (bf16) network outputs: the wrapper does NOT upcast them on the host side.
    feats = jax.random.normal(k_feat, (B, D), dtype=jnp.float32).astype(jnp.bfloat16)
    logits = jax.random.normal(k_logit, (B, C), dtype=jnp.float32).astype(jnp.bfloat16)
    # labels drawn from a small set so some anchors share a class (positives exist)
    labels = jax.random.randint(k_label, (B,), 0, 4, dtype=jnp.int32)

    loss = res50_loss(feats, logits, labels)
    jax.block_until_ready(loss)

    ref = _reference(feats, logits, labels)
    assert jnp.allclose(loss, ref, rtol=1e-3, atol=1e-3), (loss, ref)

    print("KERNEL_OK")
</pallas_src>

<mosaic_0001>
module attributes {stable_mosaic.version = 11 : i64} {
  func.func @_res50_loss_kernel(%arg0: i32, %arg1: memref<8x32xbf16, #tpu.memory_space<vmem>>, %arg2: memref<8x16xbf16, #tpu.memory_space<vmem>>, %arg3: memref<8x1xi32, #tpu.memory_space<vmem>>, %arg4: memref<1x8xi32, #tpu.memory_space<vmem>>, %arg5: memref<1xf32, #tpu.memory_space<smem>>, %arg6: memref<8x1xf32, #tpu.memory_space<vmem>>, %arg7: memref<8x1xf32, #tpu.memory_space<vmem>>, %arg8: memref<8x1xf32, #tpu.memory_space<vmem>>) attributes {dimension_semantics = [#tpu.dimension_semantics<arbitrary>], iteration_bounds = array<i64: 1>, scalar_prefetch = 0 : i64, scratch_operands = 3 : i64, tpu.core_type = #tpu.core_type<tc>, window_params = [{pipeline_mode = #tpu.pipeline_mode<synchronous>, transform_indices = @transform_0, window_bounds = array<i64: 8, 32>}, {transform_indices = @transform_1, window_bounds = array<i64: 8, 16>}, {pipeline_mode = #tpu.pipeline_mode<synchronous>, transform_indices = @transform_2, window_bounds = array<i64: 8, 1>}, {pipeline_mode = #tpu.pipeline_mode<synchronous>, transform_indices = @transform_3, window_bounds = array<i64: 1, 8>}, {transform_indices = @transform_4, window_bounds = array<i64: 1>}]} {
    %c0_i32 = arith.constant 0 : i32
    %0 = arith.cmpi eq, %arg0, %c0_i32 : i32
    %1 = arith.extui %0 : i1 to i32
    %c0_i32_0 = arith.constant 0 : i32
    %2 = arith.cmpi ne, %1, %c0_i32_0 : i32
    scf.if %2 {
      %cst_22 = arith.constant 0xFF800000 : f32
      %40 = vector.broadcast %cst_22 : f32 to vector<8x1xf32>
      %c0_23 = arith.constant 0 : index
      %c0_24 = arith.constant 0 : index
      %41 = vector.load %arg6[%c0_23, %c0_24] : memref<8x1xf32, #tpu.memory_space<vmem>>, vector<8x1xf32>
      tpu.vector_store %arg6[%c0_23, %c0_24], %40 {strides = array<i32>} : memref<8x1xf32, #tpu.memory_space<vmem>>, vector<8x1xf32>,
      %cst_25 = arith.constant 0.000000e+00 : f32
      %42 = vector.broadcast %cst_25 : f32 to vector<8x1xf32>
      %c0_26 = arith.constant 0 : index
      %c0_27 = arith.constant 0 : index
      %43 = vector.load %arg7[%c0_26, %c0_27] : memref<8x1xf32, #tpu.memory_space<vmem>>, vector<8x1xf32>
      tpu.vector_store %arg7[%c0_26, %c0_27], %42 {strides = array<i32>} : memref<8x1xf32, #tpu.memory_space<vmem>>, vector<8x1xf32>,
      %cst_28 = arith.constant 0.000000e+00 : f32
      %44 = vector.broadcast %cst_28 : f32 to vector<8x1xf32>
      %c0_29 = arith.constant 0 : index
      %c0_30 = arith.constant 0 : index
      %45 = vector.load %arg8[%c0_29, %c0_30] : memref<8x1xf32, #tpu.memory_space<vmem>>, vector<8x1xf32>
      tpu.vector_store %arg8[%c0_29, %c0_30], %44 {strides = array<i32>} : memref<8x1xf32, #tpu.memory_space<vmem>>, vector<8x1xf32>,
    } else {
    }
    %c0 = arith.constant 0 : index
    %c0_1 = arith.constant 0 : index
    %3 = vector.load %arg2[%c0, %c0_1] : memref<8x16xbf16, #tpu.memory_space<vmem>>, vector<8x16xbf16>
    %4 = arith.extf %3 : vector<8x16xbf16> to vector<8x16xf32>
    %c0_2 = arith.constant 0 : index
    %c0_3 = arith.constant 0 : index
    %5 = vector.load %arg3[%c0_2, %c0_3] : memref<8x1xi32, #tpu.memory_space<vmem>>, vector<8x1xi32>
    %cst = arith.constant dense<0xFF800000> : vector<8xf32>
    %6 = vector.multi_reduction <maximumf>, %4, %cst [1] : vector<8x16xf32> to vector<8xf32>
    %7 = vector.shape_cast %6 : vector<8xf32> to vector<8x1xf32>
    %c0_4 = arith.constant 0 : index
    %c0_5 = arith.constant 0 : index
    %8 = vector.load %arg6[%c0_4, %c0_5] : memref<8x1xf32, #tpu.memory_space<vmem>>, vector<8x1xf32>
    %9 = arith.maximumf %8, %7 : vector<8x1xf32>
    %c0_6 = arith.constant 0 : index
    %c0_7 = arith.constant 0 : index
    %10 = vector.load %arg6[%c0_6, %c0_7] : memref<8x1xf32, #tpu.memory_space<vmem>>, vector<8x1xf32>
    %11 = arith.subf %10, %9 : vector<8x1xf32>
    %12 = math.exp %11 : vector<8x1xf32>
    %c0_8 = arith.constant 0 : index
    %c0_9 = arith.constant 0 : index
    %13 = vector.load %arg7[%c0_8, %c0_9] : memref<8x1xf32, #tpu.memory_space<vmem>>, vector<8x1xf32>
    %14 = arith.mulf %12, %13 : vector<8x1xf32>
    %15 = vector.broadcast %9 : vector<8x1xf32> to vector<8x16xf32>
    %16 = arith.subf %4, %15 : vector<8x16xf32>
    %17 = math.exp %16 : vector<8x16xf32>
    %cst_10 = arith.constant dense<0.000000e+00> : vector<8xf32>
    %18 = vector.multi_reduction <add>, %17, %cst_10 [1] : vector<8x16xf32> to vector<8xf32>
    %19 = vector.shape_cast %18 : vector<8xf32> to vector<8x1xf32>
    %20 = arith.addf %14, %19 : vector<8x1xf32>
    %c0_11 = arith.constant 0 : index
    %c0_12 = arith.constant 0 : index
    %21 = vector.load %arg7[%c0_11, %c0_12] : memref<8x1xf32, #tpu.memory_space<vmem>>, vector<8x1xf32>
    tpu.vector_store %arg7[%c0_11, %c0_12], %20 {strides = array<i32>} : memref<8x1xf32, #tpu.memory_space<vmem>>, vector<8x1xf32>,
    %c0_13 = arith.constant 0 : index
    %c0_14 = arith.constant 0 : index
    %22 = vector.load %arg6[%c0_13, %c0_14] : memref<8x1xf32, #tpu.memory_space<vmem>>, vector<8x1xf32>
    tpu.vector_store %arg6[%c0_13, %c0_14], %9 {strides = array<i32>} : memref<8x1xf32, #tpu.memory_space<vmem>>, vector<8x1xf32>,
    %23 = tpu.iota {dimensions = array<i32: 1>} : vector<8x16xi32>
    %c16_i32 = arith.constant 16 : i32
    %24 = arith.muli %arg0, %c16_i32 : i32
    %25 = vector.broadcast %24 : i32 to vector<8x16xi32>
    %26 = arith.addi %23, %25 : vector<8x16xi32>
    %27 = vector.broadcast %5 : vector<8x1xi32> to vector<8x16xi32>
    %28 = arith.cmpi eq, %26, %27 : vector<8x16xi32>
    %29 = arith.extui %28 : vector<8x16xi1> to vector<8x16xi32>
    %30 = arith.sitofp %29 : vector<8x16xi32> to vector<8x16xf32>
    %c0_15 = arith.constant 0 : index
    %c0_16 = arith.constant 0 : index
    %31 = vector.load %arg8[%c0_15, %c0_16] : memref<8x1xf32, #tpu.memory_space<vmem>>, vector<8x1xf32>
    %32 = arith.mulf %4, %30 : vector<8x16xf32>
    %cst_17 = arith.constant dense<0.000000e+00> : vector<8xf32>
    %33 = vector.multi_reduction <add>, %32, %cst_17 [1] : vector<8x16xf32> to vector<8xf32>
    %34 = vector.shape_cast %33 : vector<8xf32> to vector<8x1xf32>
    %35 = arith.addf %31, %34 : vector<8x1xf32>
    %c0_18 = arith.constant 0 : index
    %c0_19 = arith.constant 0 : index
    %36 = vector.load %arg8[%c0_18, %c0_19] : memref<8x1xf32, #tpu.memory_space<vmem>>, vector<8x1xf32>
    tpu.vector_store %arg8[%c0_18, %c0_19], %35 {strides = array<i32>} : memref<8x1xf32, #tpu.memory_space<vmem>>, vector<8x1xf32>,
    %c0_i32_20 = arith.constant 0 : i32
    %37 = arith.cmpi eq, %arg0, %c0_i32_20 : i32
    %38 = arith.extui %37 : i1 to i32
    %c0_i32_21 = arith.constant 0 : i32
    %39 = arith.cmpi ne, %38, %c0_i32_21 : i32
    scf.if %39 {
      %c0_22 = arith.constant 0 : index
      %c0_23 = arith.constant 0 : index
      %40 = vector.load %arg6[%c0_22, %c0_23] : memref<8x1xf32, #tpu.memory_space<vmem>>, vector<8x1xf32>
      %c0_24 = arith.constant 0 : index
      %c0_25 = arith.constant 0 : index
      %41 = vector.load %arg7[%c0_24, %c0_25] : memref<8x1xf32, #tpu.memory_space<vmem>>, vector<8x1xf32>
      %42 = math.log %41 : vector<8x1xf32>
      %43 = arith.addf %40, %42 : vector<8x1xf32>
      %c0_26 = arith.constant 0 : index
      %c0_27 = arith.constant 0 : index
      %44 = vector.load %arg8[%c0_26, %c0_27] : memref<8x1xf32, #tpu.memory_space<vmem>>, vector<8x1xf32>
      %45 = arith.subf %43, %44 : vector<8x1xf32>
      %46 = vector.shape_cast %45 : vector<8x1xf32> to vector<1x8x1xf32>
      %cst_28 = arith.constant dense<0.000000e+00> : vector<1xf32>
      %47 = vector.multi_reduction <add>, %46, %cst_28 [1, 2] : vector<1x8x1xf32> to vector<1xf32>
      %48 = vector.shape_cast %47 : vector<1xf32> to vector<1x1x1xf32>
      %49 = vector.extract %48[0, 0, 0] : f32 from vector<1x1x1xf32>
      %cst_29 = arith.constant 8.000000e+00 : f32
      %50 = arith.divf %49, %cst_29 : f32
      %c0_30 = arith.constant 0 : index
      %c0_31 = arith.constant 0 : index
      %51 = vector.load %arg1[%c0_30, %c0_31] : memref<8x32xbf16, #tpu.memory_space<vmem>>, vector<8x32xbf16>
      %c0_32 = arith.constant 0 : index
      %c0_33 = arith.constant 0 : index
      %52 = vector.load %arg1[%c0_32, %c0_33] : memref<8x32xbf16, #tpu.memory_space<vmem>>, vector<8x32xbf16>
      %53 = arith.extf %52 : vector<8x32xbf16> to vector<8x32xf32>
      %cst_34 = arith.constant dense<0.000000e+00> : vector<8x8xf32>
      %54 = tpu.matmul %51, %51, %cst_34 {dimension_numbers = #tpu.dot_dimension_numbers<[1], [1], [0], [0], [0, 0, 1, 0], [], []>} : vector<8x32xbf16>, vector<8x32xbf16>, vector<8x8xf32> -> vector<8x8xf32>
      %55 = arith.mulf %53, %53 : vector<8x32xf32>
      %cst_35 = arith.constant dense<0.000000e+00> : vector<8xf32>
      %56 = vector.multi_reduction <add>, %55, %cst_35 [1] : vector<8x32xf32> to vector<8xf32>
      %57 = vector.shape_cast %56 : vector<8xf32> to vector<8x1xf32>
      %cst_36 = arith.constant 1.000000e+00 : f32
      %58 = vector.broadcast %cst_36 : f32 to vector<1x32xf32>
      %cst_37 = arith.constant dense<0.000000e+00> : vector<1x8xf32>
      %59 = tpu.matmul %58, %55, %cst_37 {dimension_numbers = #tpu.dot_dimension_numbers<[1], [1], [0], [0], [0, 0, 1, 0], [], []>} : vector<1x32xf32>, vector<8x32xf32>, vector<1x8xf32> -> vector<1x8xf32>
      %60 = vector.broadcast %57 : vector<8x1xf32> to vector<8x8xf32>
      %61 = vector.broadcast %59 : vector<1x8xf32> to vector<8x8xf32>
      %62 = arith.addf %60, %61 : vector<8x8xf32>
      %cst_38 = arith.constant 2.000000e+00 : f32
      %63 = vector.broadcast %cst_38 : f32 to vector<8x8xf32>
      %64 = arith.mulf %63, %54 : vector<8x8xf32>
      %65 = arith.subf %62, %64 : vector<8x8xf32>
      %cst_39 = arith.constant 9.99999996E-13 : f32
      %66 = vector.broadcast %cst_39 : f32 to vector<8x8xf32>
      %67 = arith.maximumf %65, %66 : vector<8x8xf32>
      %68 = math.sqrt %67 : vector<8x8xf32>
      %c0_40 = arith.constant 0 : index
      %c0_41 = arith.constant 0 : index
      %69 = vector.load %arg4[%c0_40, %c0_41] : memref<1x8xi32, #tpu.memory_space<vmem>>, vector<1x8xi32>
      %70 = vector.broadcast %5 : vector<8x1xi32> to vector<8x8xi32>
      %71 = vector.broadcast %69 : vector<1x8xi32> to vector<8x8xi32>
      %72 = arith.cmpi eq, %70, %71 : vector<8x8xi32>
      %cst_42 = arith.constant 0.000000e+00 : f32
      %73 = vector.broadcast %cst_42 : f32 to vector<8x8xf32>
      %74 = arith.select %72, %68, %73 : vector<8x8xi1>, vector<8x8xf32>
      %cst_43 = arith.constant dense<0xFF800000> : vector<8xf32>
      %75 = vector.multi_reduction <maximumf>, %74, %cst_43 [1] : vector<8x8xf32> to vector<8xf32>
      %76 = vector.shape_cast %75 : vector<8xf32> to vector<8x1xf32>
      %cst_44 = arith.constant 0x7F800000 : f32
      %77 = vector.broadcast %cst_44 : f32 to vector<8x8xf32>
      %78 = arith.select %72, %77, %68 : vector<8x8xi1>, vector<8x8xf32>
      %cst_45 = arith.constant dense<0x7F800000> : vector<8xf32>
      %79 = vector.multi_reduction <minimumf>, %78, %cst_45 [1] : vector<8x8xf32> to vector<8xf32>
      %80 = vector.shape_cast %79 : vector<8xf32> to vector<8x1xf32>
      %cst_46 = arith.constant 1.200000e+00 : f32
      %81 = vector.broadcast %cst_46 : f32 to vector<8x1xf32>
      %82 = arith.addf %81, %76 : vector<8x1xf32>
      %83 = arith.subf %82, %80 : vector<8x1xf32>
      %cst_47 = arith.constant 0.000000e+00 : f32
      %84 = vector.broadcast %cst_47 : f32 to vector<8x1xf32>
      %85 = arith.maximumf %83, %84 : vector<8x1xf32>
      %86 = vector.shape_cast %85 : vector<8x1xf32> to vector<1x8x1xf32>
      %cst_48 = arith.constant dense<0.000000e+00> : vector<1xf32>
      %87 = vector.multi_reduction <add>, %86, %cst_48 [1, 2] : vector<1x8x1xf32> to vector<1xf32>
      %88 = vector.shape_cast %87 : vector<1xf32> to vector<1x1x1xf32>
      %89 = vector.extract %88[0, 0, 0] : f32 from vector<1x1x1xf32>
      %cst_49 = arith.constant 8.000000e+00 : f32
      %90 = arith.divf %89, %cst_49 : f32
      %cst_50 = arith.constant 2.000000e+00 : f32
      %91 = arith.mulf %cst_50, %50 : f32
      %92 = arith.addf %90, %91 : f32
      %c0_51 = arith.constant 0 : index
      %93 = memref.load %arg5[%c0_51] : memref<1xf32, #tpu.memory_space<smem>>
      memref.store %92, %arg5[%c0_51] : memref<1xf32, #tpu.memory_space<smem>>
    } else {
    }
    return
  }
  func.func @transform_0(%arg0: i32) -> (i32, i32) {
    %c0_i32 = arith.constant 0 : i32
    %c0_i32_0 = arith.constant 0 : i32
    %c0_i32_1 = arith.constant 0 : i32
    return %c0_i32, %c0_i32_0 : i32, i32
  }
  func.func @transform_1(%arg0: i32) -> (i32, i32) {
    %c0_i32 = arith.constant 0 : i32
    %c0_i32_0 = arith.constant 0 : i32
    return %c0_i32, %arg0 : i32, i32
  }
  func.func @transform_2(%arg0: i32) -> (i32, i32) {
    %c0_i32 = arith.constant 0 : i32
    %c0_i32_0 = arith.constant 0 : i32
    %c0_i32_1 = arith.constant 0 : i32
    return %c0_i32, %c0_i32_0 : i32, i32
  }
  func.func @transform_3(%arg0: i32) -> (i32, i32) {
    %c0_i32 = arith.constant 0 : i32
    %c0_i32_0 = arith.constant 0 : i32
    %c0_i32_1 = arith.constant 0 : i32
    return %c0_i32, %c0_i32_0 : i32, i32
  }
  func.func @transform_4(%arg0: i32) -> i32 {
    %c0_i32 = arith.constant 0 : i32
    %c0_i32_0 = arith.constant 0 : i32
    return %c0_i32 : i32
  }
}

</mosaic_0001>

<llo_original>
// kernel: tpu_custom_call.1
$region0: #{tpu_custom_call.1}
  #allocation0 [shape = 'u32[]', space=smem, size = 0x4, offset = 0x4, fixed_abs, tag = 'smem constant byte address 0x4 - core index']
  #allocation1 [shape = 'u32[144,128]{1,0:T(1,128)}', space=vmem, size = 0x12000, scoped, tag = 'internal scratch']
  #allocation2 [shape = 'f32[8,1]{1,0:T(8,128)}', space=vmem, size = 0x1000, scoped, tag = 'scratch operand']
  #allocation3 [shape = 'f32[8,1]{1,0:T(8,128)}', space=vmem, size = 0x1000, scoped, tag = 'scratch operand']
  #allocation4 [shape = 'f32[8,1]{1,0:T(8,128)}', space=vmem, size = 0x1000, scoped, tag = 'scratch operand']
  %s0 = inlined_call_operand.vmem [shape: bf16[8,32], index: 0, kind: input, shape index: {}]
  %s1 = inlined_call_operand.vmem [shape: bf16[8,16], index: 1, kind: input, shape index: {}]
  %s2 = inlined_call_operand.vmem [shape: s32[8,1], index: 2, kind: input, shape index: {}]
  %s3 = inlined_call_operand.vmem [shape: s32[1,8], index: 3, kind: input, shape index: {}]
  %s4 = inlined_call_operand.hbm [shape: f32[1], index: 4, kind: output, shape index: {}]
  %s5 = sld [smem:[#allocation0]]
  $region34: #{tpu_custom_call.1} parent=0
    _
  %s7 = ssub.s32 1, %s5
  %s8 = scalar_select 0, %s7, %s5
  $region1: #{tpu_custom_call.1} parent=0
    #allocation5 [shape = 'u8[512]{0}', space=smem, size = 0x200, scoped, tag = 'output window, operand 0, single buffered']
    #allocation6 [shape = 's32[1]{0}', space=sflag, size = 0x4, scoped, tag = 'scoped memory for tpu_custom_call.1']
    %9 = vsyncpa [#allocation6], 0
    // Predicated region
    $region2: #{tpu_custom_call.1} parent=1 // pred_check
      _
    $region3: #{tpu_custom_call.1} parent=1 // pred_check_branch
      %11 = sbr.rel (0) target = $region5
    $region4: #{tpu_custom_call.1} parent=1 // pred_region
      _
    $region5: #{tpu_custom_call.1} parent=1 // pred_fallthru
      _
    // Predicated region
    $region6: #{tpu_custom_call.1} parent=1 // pred_check
      _
    $region7: #{tpu_custom_call.1} parent=1 // pred_check_branch
      %13 = sbr.rel (0) target = $region9
    $region8: #{tpu_custom_call.1} parent=1 // pred_region
      _
    $region9: #{tpu_custom_call.1} parent=1 // pred_fallthru
      _
    // Predicated region
    $region10: #{tpu_custom_call.1} parent=1 // pred_check
      _
    $region11: #{tpu_custom_call.1} parent=1 // pred_check_branch
      %15 = sbr.rel (0) target = $region13
    $region12: #{tpu_custom_call.1} parent=1 // pred_region
      _
    $region13: #{tpu_custom_call.1} parent=1 // pred_fallthru
      _
    // Predicated region
    $region14: #{tpu_custom_call.1} parent=1 // pred_check
      _
    $region15: #{tpu_custom_call.1} parent=1 // pred_check_branch
      %17 = sbr.rel (0) target = $region17
    $region16: #{tpu_custom_call.1} parent=1 // pred_region
      _
    $region17: #{tpu_custom_call.1} parent=1 // pred_fallthru
      _
    %p19 = scmp.eq.s32.totalorder 0, 0
    // Predicated region
    $region18: #{tpu_custom_call.1} parent=1 // pred_check
      %p20 = pneg %p19
    $region19: #{tpu_custom_call.1} parent=1 // pred_check_branch
      %22 = sbr.rel (%p20) target = $region21
    $region20: #{tpu_custom_call.1} parent=1 // pred_region
      %vm23 = vcmask 7168
      %24 = vst.msk [vmem:[#allocation2] sm:$0xff] %vm23, -inf
      %25 = vst.msk [vmem:[#allocation3] sm:$0xff] %vm23, 0.0
      %26 = vst.msk [vmem:[#allocation4] sm:$0xff] %vm23, 0.0
    $region21: #{tpu_custom_call.1} parent=1 // pred_fallthru
      _
    %v27 = vld [vmem:[%s1] sm:$0xf]
    %v28 = vunpack.c.l.bf16 %v27
    %v29 = vld [vmem:[%s2] sm:$0xff]
    %vm30 = vcmask 130048
    %v31 = vsel %vm30, %v28, -inf
    %32 = vmax.xlane.f32.xlu0 %v31
    %v33 = vpop.xlane.xlu0 %32
    %v34 = vld [vmem:[#allocation2] sm:$0xff]
    %v35 = vmax.f32 %v34, %v33
    %v36 = vsub.f32 %v34, %v35
    %v37 = vmul.f32 %v36, 1.442695
    %v38 = vpow.pop %v37
    %v39 = vld [vmem:[#allocation3] sm:$0xff]
    %v40 = vmul.f32 %v38, %v39
    %42 = vset.pattern.permute.xlu0 0
    %43 = vperm.xlu0 %42, %v35
    %v44 = vpop.permute.xlu0 %43
    %v46 = vsub.f32 %v28, %v44
    %v47 = vmul.f32 %v46, 1.442695
    %v48 = vpow.pop %v47
    %v49 = vsel %vm30, %v48, 0.0
    %50 = vadd.xlane.f32.xlu0 %v49
    %v51 = vpop.xlane.xlu0 %50
    %v52 = vadd.f32 %v40, %v51
    %vm53 = vcmask 7168
    %54 = vst.msk [vmem:[#allocation3] sm:$0xff] %vm53, %v52
    %55 = vst.msk [vmem:[#allocation2] sm:$0xff] %vm53, %v35
    %v56 = vlaneseq
    %v57 = vand.u32 %v56, 127
    %s58 = smul.u32 0, 16
    %v59 = vstv %s58
    %v60 = vadd.s32 %v57, %v59
    %61 = vset.pattern.permute.xlu0 0
    %62 = vperm.xlu0 %61, %v29
    %v63 = vpop.permute.xlu0 %62
    %vm64 = vcmp.eq.s32.totalorder %v60, %v63
    %v65 = vsel %vm64, 1, 0
    %v66 = vcvt.s32.f32 %v65
    %v67 = vld [vmem:[#allocation4] sm:$0xff]
    %v68 = vmul.f32 %v28, %v66
    %v69 = vsel %vm30, %v68, 0.0
    %70 = vadd.xlane.f32.xlu0 %v69
    %v71 = vpop.xlane.xlu0 %70
    %v72 = vadd.f32 %v67, %v71
    %73 = vst.msk [vmem:[#allocation4] sm:$0xff] %vm53, %v72
    // Predicated region
    $region22: #{tpu_custom_call.1} parent=1 // pred_check
      %p74 = pneg %p19
    $region23: #{tpu_custom_call.1} parent=1 // pred_check_branch
      %76 = sbr.rel (%p74) target = $region25
    $region24: #{tpu_custom_call.1} parent=1 // pred_region
      %v77 = vld [vmem:[#allocation2] sm:$0xff]
      %v78 = vld [vmem:[#allocation3] sm:$0xff]
      %v79 = vlog2.pop %v78
      %v80 = vmul.f32 %v79, 0.6931472
      %v81 = vadd.f32 %v77, %v80
      %v82 = vld [vmem:[#allocation4] sm:$0xff]
      %v83 = vsub.f32 %v81, %v82
      %v84 = vsel %vm53, %v83, 0.0
      %85 = vadd.xlane.f32.xlu0 %v84
      %v86 = vpop.xlane.xlu0 %85
      %v87 = vrot.slane %v86, 4
      %v88 = vadd.f32 %v86, %v87
      %v89 = vrot.slane %v88, 2
      %v90 = vadd.f32 %v88, %v89
      %v91 = vrot.slane %v90, 1
      %v92 = vadd.f32 %v90, %v91
      %s93 = vtos %v92
      %v94 = vrcp.pop 8.0
      %s95 = vtos %v94
      %s96 = smul.f32 %s93, %s95
      %v97 = vld [vmem:[%s0] sm:$0xf]
      %v98 = vunpack.c.l.bf16 %v97
      %vm99 = vcmask 261120
      %v101 = vsel %vm99, %v97, 0
      %103 = vmatprep.subr.bf16.mxu0 0
      %104 = vmatpush1.bf16.xpose.msra.mxu0 %v101
      %105 = vmatprep.subr.bf16.mxu0 0
      %106 = vmatpush1.bf16.xpose.msra.mxu0 0
      %107 = vmatprep.subr.bf16.mxu0 0
      %108 = vmatpush1.bf16.xpose.msra.mxu0 0
      %109 = vmatprep.subr.bf16.mxu0 0
      %110 = vmatpush1.bf16.xpose.msra.mxu0 0
      %111 = vmatprep.subr.bf16.mxu0 0
      %112 = vmatpush1.bf16.xpose.msra.mxu0 0
      %113 = vmatprep.subr.bf16.mxu0 0
      %114 = vmatpush1.bf16.xpose.msra.mxu0 0
      %115 = vmatprep.subr.bf16.mxu0 0
      %116 = vmatpush1.bf16.xpose.msra.mxu0 0
      %117 = vmatprep.subr.bf16.mxu0 0
      %118 = vmatpush1.bf16.xpose.msra.mxu0 0
      %119 = vmatprep.subr.bf16.mxu0 0
      %120 = vmatpush1.bf16.xpose.msra.mxu0 0
      %121 = vmatprep.subr.bf16.mxu0 0
      %122 = vmatpush1.bf16.xpose.msra.mxu0 0
      %123 = vmatprep.subr.bf16.mxu0 0
      %124 = vmatpush1.bf16.xpose.msra.mxu0 0
      %125 = vmatprep.subr.bf16.mxu0 0
      %126 = vmatpush1.bf16.xpose.msra.mxu0 0
      %127 = vmatprep.subr.bf16.mxu0 0
      %128 = vmatpush1.bf16.xpose.msra.mxu0 0
      %129 = vmatprep.subr.bf16.mxu0 0
      %130 = vmatpush1.bf16.xpose.msra.mxu0 0
      %131 = vmatprep.subr.bf16.mxu0 0
      %132 = vmatpush1.bf16.xpose.msra.mxu0 0
      %133 = vmatprep.subr.bf16.mxu0 0
      %134 = vmatpush1.bf16.xpose.msra.mxu0 0
      %135 = vmatprep.mubr.bf16.mxu0 0
      %136 = vmatmul.mubr.bf16.gmra.mrb[0].mxu0 %v101
      %v137 = vpop.f32.mrb[0].mxu0
      %v138 = vadd.f32 0.0, %v137
      %v139 = vpop.f32.mrb[0].mxu0
      %v140 = vpop.f32.mrb[0].mxu0
      %v141 = vpop.f32.mrb[0].mxu0
      %142 = vdwg.mxu0
      %v143 = vmul.f32 %v98, %v98
      %v144 = vsel %vm99, %v143, 0.0
      %145 = vadd.xlane.f32.xlu0 %v144
      %v146 = vpop.xlane.xlu0 %145
      %v148 = vsel %vm99, 1.0, 0
      %v151 = vsel %vm99, %v143, 0
      %153 = vmatprep.subr.mxu0 0.0
      %154 = vmatpush1.xpose.msra.mxu0 %v151
      %155 = vmatprep.subr.mxu0 0.0
      %156 = vmatpush1.xpose.msra.mxu0 0.0
      %157 = vmatprep.subr.mxu0 0.0
      %158 = vmatpush1.xpose.msra.mxu0 0.0
      %159 = vmatprep.subr.mxu0 0.0
      %160 = vmatpush1.xpose.msra.mxu0 0.0
      %161 = vmatprep.subr.mxu0 0.0
      %162 = vmatpush1.xpose.msra.mxu0 0.0
      %163 = vmatprep.subr.mxu0 0.0
      %164 = vmatpush1.xpose.msra.mxu0 0.0
      %165 = vmatprep.subr.mxu0 0.0
      %166 = vmatpush1.xpose.msra.mxu0 0.0
      %167 = vmatprep.subr.mxu0 0.0
      %168 = vmatpush1.xpose.msra.mxu0 0.0
      %169 = vmatprep.subr.mxu0 0.0
      %170 = vmatpush1.xpose.msra.mxu0 0.0
      %171 = vmatprep.subr.mxu0 0.0
      %172 = vmatpush1.xpose.msra.mxu0 0.0
      %173 = vmatprep.subr.mxu0 0.0
      %174 = vmatpush1.xpose.msra.mxu0 0.0
      %175 = vmatprep.subr.mxu0 0.0
      %176 = vmatpush1.xpose.msra.mxu0 0.0
      %177 = vmatprep.subr.mxu0 0.0
      %178 = vmatpush1.xpose.msra.mxu0 0.0
      %179 = vmatprep.subr.mxu0 0.0
      %180 = vmatpush1.xpose.msra.mxu0 0.0
      %181 = vmatprep.subr.mxu0 0.0
      %182 = vmatpush1.xpose.msra.mxu0 0.0
      %183 = vmatprep.subr.mxu0 0.0
      %184 = vmatpush1.xpose.msra.mxu0 0.0
      %185 = vmatprep.subr.mxu0 0.0
      %186 = vmatpush1.xpose.msra.mxu0 0.0
      %187 = vmatprep.subr.mxu0 0.0
      %188 = vmatpush1.xpose.msra.mxu0 0.0
      %189 = vmatprep.subr.mxu0 0.0
      %190 = vmatpush1.xpose.msra.mxu0 0.0
      %191 = vmatprep.subr.mxu0 0.0
      %192 = vmatpush1.xpose.msra.mxu0 0.0
      %193 = vmatprep.subr.mxu0 0.0
      %194 = vmatpush1.xpose.msra.mxu0 0.0
      %195 = vmatprep.subr.mxu0 0.0
      %196 = vmatpush1.xpose.msra.mxu0 0.0
      %197 = vmatprep.subr.mxu0 0.0
      %198 = vmatpush1.xpose.msra.mxu0 0.0
      %199 = vmatprep.subr.mxu0 0.0
      %200 = vmatpush1.xpose.msra.mxu0 0.0
      %201 = vmatprep.subr.mxu0 0.0
      %202 = vmatpush1.xpose.msra.mxu0 0.0
      %203 = vmatprep.subr.mxu0 0.0
      %204 = vmatpush1.xpose.msra.mxu0 0.0
      %205 = vmatprep.subr.mxu0 0.0
      %206 = vmatpush1.xpose.msra.mxu0 0.0
      %207 = vmatprep.subr.mxu0 0.0
      %208 = vmatpush1.xpose.msra.mxu0 0.0
      %209 = vmatprep.subr.mxu0 0.0
      %210 = vmatpush1.xpose.msra.mxu0 0.0
      %211 = vmatprep.subr.mxu0 0.0
      %212 = vmatpush1.xpose.msra.mxu0 0.0
      %213 = vmatprep.subr.mxu0 0.0
      %214 = vmatpush1.xpose.msra.mxu0 0.0
      %215 = vmatprep.subr.mxu0 0.0
      %216 = vmatpush1.xpose.msra.mxu0 0.0
      %217 = vmatprep.mubr.f32.mxu0 0.0
      %218 = vmatmul.mubr.f32.gmra.mrb[0].mxu0 %v148
      %v219 = vpop.f32.mrb[0].mxu0
      %v220 = vadd.f32 0.0, %v219
      %v221 = vpop.f32.mrb[0].mxu0
      %222 = vdwg.mxu0
      %v223 = vlaneseq
      %v224 = vshrl.u32 %v223, 7
      %v225 = vsub.s32 0, %v224
      %v226 = vrot.slane %v220, %v225
      %v227 = vadd.f32 %v146, %v226
      %v228 = vmul.f32 %v138, 2.0
      %v229 = vsub.f32 %v227, %v228
      %v230 = vmax.f32 %v229, 1e-12
      %v231 = vrsqrt.pop %v230
      %v232 = vmul.f32 %v230, %v231
      %vm233 = vcmp.eq.f32.partialorder %v230, inf
      %v234 = vsel %vm233, %v230, %v232
      %vm235 = vcmp.eq.f32.partialorder %v230, 0.0
      %v236 = vand.u32 %v230, 2147483648
      %v237 = vsel %vm235, %v236, %v234
      %v238 = vld [vmem:[%s3] sm:$0x1]
      %v239 = vlaneseq
      %v240 = vshrl.u32 %v239, 7
      %v241 = vsub.s32 0, %v240
      %v242 = vrot.slane %v238, %v241
      %vm243 = vcmp.eq.s32.totalorder %v63, %v242
      %v244 = vsel %vm243, %v237, 0.0
      %vm245 = vcmask 64512
      %v246 = vsel %vm245, %v244, -inf
      %247 = vmax.xlane.f32.xlu0 %v246
      %v248 = vpop.xlane.xlu0 %247
      %v249 = vsel %vm243, inf, %v237
      %v250 = vsel %vm245, %v249, inf
      %251 = vmin.xlane.f32.xlu0 %v250
      %v252 = vpop.xlane.xlu0 %251
      %v253 = vadd.f32 %v248, 1.2
      %v254 = vsub.f32 %v253, %v252
      %v255 = vmax.f32 %v254, 0.0
      %v256 = vsel %vm53, %v255, 0.0
      %257 = vadd.xlane.f32.xlu0 %v256
      %v258 = vpop.xlane.xlu0 %257
      %v259 = vrot.slane %v258, 4
      %v260 = vadd.f32 %v258, %v259
      %v261 = vrot.slane %v260, 2
      %v262 = vadd.f32 %v260, %v261
      %v263 = vrot.slane %v262, 1
      %v264 = vadd.f32 %v262, %v263
      %s265 = vtos %v264
      %v266 = vrcp.pop 8.0
      %s267 = vtos %v266
      %s268 = smul.f32 %s265, %s267
      %s269 = smul.f32 %s96, 2.0
      %s270 = sadd.f32 %s268, %s269
      %s271 = scalar_lea.smem [#allocation5], 0
      %272 = sst [smem:[%s271]] %s270
    $region25: #{tpu_custom_call.1} parent=1 // pred_fallthru
      _
    // Predicated region
    $region26: #{tpu_custom_call.1} parent=1 // pred_check
      _
    $region27: #{tpu_custom_call.1} parent=1 // pred_check_branch
      %274 = sbr.rel (0) target = $region29
    $region28: #{tpu_custom_call.1} parent=1 // pred_region
      %s276 = ssub.s32 16, 16
      %277 = vsyncadd [#allocation6], %s276
      %280 = dma.smem_to_hbm [#allocation5], 16, %s4, [#allocation6]
    $region29: #{tpu_custom_call.1} parent=1 // pred_fallthru
      _
    // Predicated region
    $region30: #{tpu_custom_call.1} parent=1 // pred_check
      _
    $region31: #{tpu_custom_call.1} parent=1 // pred_check_branch
      %282 = sbr.rel (0) target = $region33
    $region32: #{tpu_custom_call.1} parent=1 // pred_region
      %283 = dma.done [#allocation6], 16
    $region33: #{tpu_custom_call.1} parent=1 // pred_fallthru
      _
    %284 = sfence
    %285 = vsyncpa [#allocation6], 1

</llo_original>
